<compile_context>
chip_gen: v6e
topology: v6e:2x2x1
jax: 0.10.0
libtpu: 0.0.40
codegen_flags: <defaults>
</compile_context>

<pallas_src>
import jax
import jax.numpy as jnp
from jax.experimental import pallas as pl
from jax.experimental.pallas import tpu as pltpu

C_IN = 20    # conv1d_1 in_channels
C_MID = 10   # conv1d_1/2 out_channels
C_OUT = 1    # conv1d_3 out_channels
K = 9        # kernel_size
PAD = 4      # padding (same-length conv)

CP_IN = 24   # C_IN  zero-padded up to a multiple of 8 (sublane alignment)
CP_MID = 16  # C_MID zero-padded up to a multiple of 8


def da_feat_kernel(x_ref, w1_ref, b1_ref, w2_ref, b2_ref, w3_ref, b3_ref,
                   o_ref, hs_ref):
    # x_ref : (1, CP_IN, L + 2*PAD)   channels-first, zero-padded input
    # w1_ref: (CP_MID, K*CP_IN)       fused im2col weights, [co, k*CP_IN + ci]
    # w2_ref: (CP_MID, K*CP_MID)
    # w3_ref: (CP_MID, K)             layer-3 (C_OUT = 1) weights
    # b1/b2 : (CP_MID, 1);  b3: (1, 1)
    # o_ref : (1, 1, L)               lane-dense output row
    # hs_ref: VMEM scratch (CP_MID, L + 2*PAD), reused for h1 and h2
    L = o_ref.shape[2]

    # Keep only the conv-halo columns of the scratch at zero (2 tiny (16, 4) stores).
    zb = jnp.zeros((CP_MID, PAD), jnp.float32)
    hs_ref[:, 0:PAD] = zb
    hs_ref[:, PAD + L:] = zb

    xp = x_ref[0]                                                       # (CP_IN, L+2*PAD)

    # ---- layer 1: Conv1d(20->10, k=9, pad=4) + ReLU, one deep MXU contraction ----
    col1 = jnp.concatenate([xp[:, k:k + L] for k in range(K)], axis=0)  # (K*CP_IN, L)
    a1 = jnp.dot(w1_ref[...], col1, preferred_element_type=jnp.float32) # (CP_MID, L)
    a1 = jnp.maximum(a1 + b1_ref[...], 0.0)
    hs_ref[:, PAD:PAD + L] = a1          # padded channel rows are exactly 0 (zero W & b)

    # ---- layer 2: Conv1d(10->10, k=9, pad=4) + ReLU ----
    h1 = hs_ref[...]                                                    # (CP_MID, L+2*PAD)
    col2 = jnp.concatenate([h1[:, k:k + L] for k in range(K)], axis=0)  # (K*CP_MID, L)
    a2 = jnp.dot(w2_ref[...], col2, preferred_element_type=jnp.float32)
    a2 = jnp.maximum(a2 + b2_ref[...], 0.0)
    hs_ref[:, PAD:PAD + L] = a2

    # ---- layer 3: Conv1d(10->1, k=9, pad=4) + ReLU — VPU/XLU, kept off the MXU ----
    h2 = hs_ref[...]
    w3 = w3_ref[...]                                                    # (CP_MID, K)
    acc3 = jnp.zeros((CP_MID, L), jnp.float32)
    for k in range(K):                    # 9 lane-dense multiply-accumulates (VPU)
        acc3 = acc3 + h2[:, k:k + L] * w3[:, k:k + 1]
    a3 = jnp.sum(acc3, axis=0, keepdims=True) + b3_ref[...]             # one XLU reduce
    # final ReLU; relu(relu(x)) == relu(x) matches conv3-ReLU + post-flatten ReLU
    o_ref[0] = jnp.maximum(a3, 0.0)


def da_feature_extractor(x, params):
    """x: (B, L, C_IN) float32 -> features: (B, L) float32."""
    B, L, _ = x.shape
    L_pad = L + 2 * PAD

    # channels-first + zero-pad channels (sublane alignment) and sequence (conv halo)
    xcf = jnp.transpose(x, (0, 2, 1))                                   # (B, 20, L)
    x_p = jnp.pad(xcf, ((0, 0), (0, CP_IN - C_IN), (PAD, PAD)))         # (B, 24, L+8)

    # Fused im2col weights: row co, column k*CP + ci  <=  torch w[co, ci, k]
    w1 = jnp.transpose(params["w1"], (0, 2, 1))                         # (10, 9, 20)
    w1 = jnp.pad(w1, ((0, CP_MID - C_MID), (0, 0), (0, CP_IN - C_IN)))  # (16, 9, 24)
    w1 = w1.reshape(CP_MID, K * CP_IN)                                  # (16, 216)
    w2 = jnp.transpose(params["w2"], (0, 2, 1))                         # (10, 9, 10)
    w2 = jnp.pad(w2, ((0, CP_MID - C_MID), (0, 0), (0, CP_MID - C_MID)))
    w2 = w2.reshape(CP_MID, K * CP_MID)                                 # (16, 144)
    w3 = jnp.pad(params["w3"][0], ((0, CP_MID - C_MID), (0, 0)))        # (16, 9)
    b1 = jnp.pad(params["b1"], (0, CP_MID - C_MID)).reshape(CP_MID, 1)
    b2 = jnp.pad(params["b2"], (0, CP_MID - C_MID)).reshape(CP_MID, 1)
    b3 = params["b3"].reshape(1, 1)

    out = pl.pallas_call(
        da_feat_kernel,
        out_shape=jax.ShapeDtypeStruct((B, 1, L), jnp.float32),
        grid_spec=pltpu.PrefetchScalarGridSpec(
            num_scalar_prefetch=0,
            grid=(B,),
            in_specs=[
                pl.BlockSpec((1, CP_IN, L_pad), lambda b: (b, 0, 0)),
                pl.BlockSpec((CP_MID, K * CP_IN), lambda b: (0, 0)),
                pl.BlockSpec((CP_MID, 1), lambda b: (0, 0)),
                pl.BlockSpec((CP_MID, K * CP_MID), lambda b: (0, 0)),
                pl.BlockSpec((CP_MID, 1), lambda b: (0, 0)),
                pl.BlockSpec((CP_MID, K), lambda b: (0, 0)),
                pl.BlockSpec((1, 1), lambda b: (0, 0)),
            ],
            out_specs=pl.BlockSpec((1, 1, L), lambda b: (b, 0, 0)),
            scratch_shapes=[pltpu.VMEM((CP_MID, L_pad), jnp.float32)],
        ),
        compiler_params=pltpu.CompilerParams(
            dimension_semantics=("parallel",)),
    )(x_p, w1, b1, w2, b2, w3, b3)
    return out.reshape(B, L)


# ----------------- pure-JAX reference (same math, no Pallas) -----------------
def _conv1d_relu_ref(h, w, b):
    # h: (B, L, Cin), w: (Cout, Cin, K) PyTorch layout, b: (Cout,)
    B, L, _ = h.shape
    hp = jnp.pad(h, ((0, 0), (PAD, PAD), (0, 0)))
    wt = jnp.transpose(w, (2, 1, 0))  # (K, Cin, Cout)
    out = sum(jnp.einsum("blc,co->blo", hp[:, k:k + L, :], wt[k])
              for k in range(K)) + b[None, None, :]
    return jnp.maximum(out, 0.0)


def da_feature_extractor_ref(x, params):
    h = _conv1d_relu_ref(x, params["w1"], params["b1"])
    h = _conv1d_relu_ref(h, params["w2"], params["b2"])
    h = _conv1d_relu_ref(h, params["w3"], params["b3"])
    return jnp.maximum(h.reshape(x.shape[0], -1), 0.0)


if __name__ == "__main__":
    key = jax.random.PRNGKey(0)
    kx, k1, k2, k3, k4, k5, k6 = jax.random.split(key, 7)

    B, L = 2, 128   # L multiple of 128 -> fully lane-dense output/activations
    x = jax.random.normal(kx, (B, L, C_IN), dtype=jnp.float32)

    # Deterministic synthetic parameters (PyTorch Conv1d weight layout: (Cout, Cin, K)).
    params = {
        "w1": 0.1 * jax.random.normal(k1, (C_MID, C_IN, K), dtype=jnp.float32),
        "b1": 0.1 * jax.random.normal(k2, (C_MID,), dtype=jnp.float32),
        "w2": 0.1 * jax.random.normal(k3, (C_MID, C_MID, K), dtype=jnp.float32),
        "b2": 0.1 * jax.random.normal(k4, (C_MID,), dtype=jnp.float32),
        "w3": 0.1 * jax.random.normal(k5, (C_OUT, C_MID, K), dtype=jnp.float32),
        "b3": 0.1 * jax.random.normal(k6, (C_OUT,), dtype=jnp.float32),
    }

    feats = jax.block_until_ready(da_feature_extractor(x, params))
    ref = jax.block_until_ready(da_feature_extractor_ref(x, params))

    assert feats.shape == (B, L), feats.shape
    assert bool(jnp.allclose(feats, ref, atol=1e-3, rtol=1e-3)), "mismatch vs reference"
    print("KERNEL_OK")
</pallas_src>

<mosaic_0001>
module attributes {stable_mosaic.version = 11 : i64} {
  func.func @da_feat_kernel(%arg0: i32, %arg1: memref<1x24x136xf32, #tpu.memory_space<vmem>>, %arg2: memref<16x216xf32, #tpu.memory_space<vmem>>, %arg3: memref<16x1xf32, #tpu.memory_space<vmem>>, %arg4: memref<16x144xf32, #tpu.memory_space<vmem>>, %arg5: memref<16x1xf32, #tpu.memory_space<vmem>>, %arg6: memref<16x9xf32, #tpu.memory_space<vmem>>, %arg7: memref<1x1xf32, #tpu.memory_space<vmem>>, %arg8: memref<1x1x128xf32, #tpu.memory_space<vmem>>, %arg9: memref<16x136xf32, #tpu.memory_space<vmem>>) attributes {dimension_semantics = [#tpu.dimension_semantics<parallel>], iteration_bounds = array<i64: 2>, scalar_prefetch = 0 : i64, scratch_operands = 1 : i64, tpu.core_type = #tpu.core_type<tc>, window_params = [{transform_indices = @transform_0, window_bounds = array<i64: 1, 24, 136>}, {pipeline_mode = #tpu.pipeline_mode<synchronous>, transform_indices = @transform_1, window_bounds = array<i64: 16, 216>}, {pipeline_mode = #tpu.pipeline_mode<synchronous>, transform_indices = @transform_2, window_bounds = array<i64: 16, 1>}, {pipeline_mode = #tpu.pipeline_mode<synchronous>, transform_indices = @transform_3, window_bounds = array<i64: 16, 144>}, {pipeline_mode = #tpu.pipeline_mode<synchronous>, transform_indices = @transform_4, window_bounds = array<i64: 16, 1>}, {pipeline_mode = #tpu.pipeline_mode<synchronous>, transform_indices = @transform_5, window_bounds = array<i64: 16, 9>}, {pipeline_mode = #tpu.pipeline_mode<synchronous>, transform_indices = @transform_6, window_bounds = array<i64: 1, 1>}, {transform_indices = @transform_7, window_bounds = array<i64: 1, 1, 128>}]} {
    %cst = arith.constant 0.000000e+00 : f32
    %0 = vector.broadcast %cst : f32 to vector<16x4xf32>
    %c0 = arith.constant 0 : index
    %c0_0 = arith.constant 0 : index
    %1 = vector.load %arg9[%c0, %c0_0] : memref<16x136xf32, #tpu.memory_space<vmem>>, vector<16x4xf32>
    tpu.vector_store %arg9[%c0, %c0_0], %0 {strides = array<i32>} : memref<16x136xf32, #tpu.memory_space<vmem>>, vector<16x4xf32>,
    %c0_1 = arith.constant 0 : index
    %c132 = arith.constant 132 : index
    %2 = vector.load %arg9[%c0_1, %c132] : memref<16x136xf32, #tpu.memory_space<vmem>>, vector<16x4xf32>
    tpu.vector_store %arg9[%c0_1, %c132], %0 {strides = array<i32>} : memref<16x136xf32, #tpu.memory_space<vmem>>, vector<16x4xf32>,
    %c0_2 = arith.constant 0 : index
    %c0_3 = arith.constant 0 : index
    %c0_4 = arith.constant 0 : index
    %3 = vector.load %arg1[%c0_2, %c0_3, %c0_4] : memref<1x24x136xf32, #tpu.memory_space<vmem>>, vector<1x24x136xf32>
    %4 = vector.shape_cast %3 : vector<1x24x136xf32> to vector<24x136xf32>
    %5 = vector.extract_strided_slice %4 {offsets = [0, 0], sizes = [24, 128], strides = [1, 1]} : vector<24x136xf32> to vector<24x128xf32>
    %6 = vector.extract_strided_slice %4 {offsets = [0, 1], sizes = [24, 128], strides = [1, 1]} : vector<24x136xf32> to vector<24x128xf32>
    %7 = vector.extract_strided_slice %4 {offsets = [0, 2], sizes = [24, 128], strides = [1, 1]} : vector<24x136xf32> to vector<24x128xf32>
    %8 = vector.extract_strided_slice %4 {offsets = [0, 3], sizes = [24, 128], strides = [1, 1]} : vector<24x136xf32> to vector<24x128xf32>
    %9 = vector.extract_strided_slice %4 {offsets = [0, 4], sizes = [24, 128], strides = [1, 1]} : vector<24x136xf32> to vector<24x128xf32>
    %10 = vector.extract_strided_slice %4 {offsets = [0, 5], sizes = [24, 128], strides = [1, 1]} : vector<24x136xf32> to vector<24x128xf32>
    %11 = vector.extract_strided_slice %4 {offsets = [0, 6], sizes = [24, 128], strides = [1, 1]} : vector<24x136xf32> to vector<24x128xf32>
    %12 = vector.extract_strided_slice %4 {offsets = [0, 7], sizes = [24, 128], strides = [1, 1]} : vector<24x136xf32> to vector<24x128xf32>
    %13 = vector.extract_strided_slice %4 {offsets = [0, 8], sizes = [24, 128], strides = [1, 1]} : vector<24x136xf32> to vector<24x128xf32>
    %14 = tpu.concatenate %5, %6, %7, %8, %9, %10, %11, %12, %13 in 0 : vector<24x128xf32>, vector<24x128xf32>, vector<24x128xf32>, vector<24x128xf32>, vector<24x128xf32>, vector<24x128xf32>, vector<24x128xf32>, vector<24x128xf32>, vector<24x128xf32> -> vector<216x128xf32>
    %c0_5 = arith.constant 0 : index
    %c0_6 = arith.constant 0 : index
    %15 = vector.load %arg2[%c0_5, %c0_6] : memref<16x216xf32, #tpu.memory_space<vmem>>, vector<16x216xf32>
    %cst_7 = arith.constant dense<0.000000e+00> : vector<16x128xf32>
    %16 = tpu.matmul %15, %14, %cst_7 {dimension_numbers = #tpu.dot_dimension_numbers<[1], [0], [0], [1], [0, 0, 1, 1], [], []>} : vector<16x216xf32>, vector<216x128xf32>, vector<16x128xf32> -> vector<16x128xf32>
    %c0_8 = arith.constant 0 : index
    %c0_9 = arith.constant 0 : index
    %17 = vector.load %arg3[%c0_8, %c0_9] : memref<16x1xf32, #tpu.memory_space<vmem>>, vector<16x1xf32>
    %18 = vector.broadcast %17 : vector<16x1xf32> to vector<16x128xf32>
    %19 = arith.addf %16, %18 : vector<16x128xf32>
    %cst_10 = arith.constant 0.000000e+00 : f32
    %20 = vector.broadcast %cst_10 : f32 to vector<16x128xf32>
    %21 = arith.maximumf %19, %20 : vector<16x128xf32>
    %c0_11 = arith.constant 0 : index
    %c4 = arith.constant 4 : index
    %22 = vector.load %arg9[%c0_11, %c4] : memref<16x136xf32, #tpu.memory_space<vmem>>, vector<16x128xf32>
    tpu.vector_store %arg9[%c0_11, %c4], %21 {strides = array<i32>} : memref<16x136xf32, #tpu.memory_space<vmem>>, vector<16x128xf32>,
    %c0_12 = arith.constant 0 : index
    %c0_13 = arith.constant 0 : index
    %23 = vector.load %arg9[%c0_12, %c0_13] : memref<16x136xf32, #tpu.memory_space<vmem>>, vector<16x136xf32>
    %24 = vector.extract_strided_slice %23 {offsets = [0, 0], sizes = [16, 128], strides = [1, 1]} : vector<16x136xf32> to vector<16x128xf32>
    %25 = vector.extract_strided_slice %23 {offsets = [0, 1], sizes = [16, 128], strides = [1, 1]} : vector<16x136xf32> to vector<16x128xf32>
    %26 = vector.extract_strided_slice %23 {offsets = [0, 2], sizes = [16, 128], strides = [1, 1]} : vector<16x136xf32> to vector<16x128xf32>
    %27 = vector.extract_strided_slice %23 {offsets = [0, 3], sizes = [16, 128], strides = [1, 1]} : vector<16x136xf32> to vector<16x128xf32>
    %28 = vector.extract_strided_slice %23 {offsets = [0, 4], sizes = [16, 128], strides = [1, 1]} : vector<16x136xf32> to vector<16x128xf32>
    %29 = vector.extract_strided_slice %23 {offsets = [0, 5], sizes = [16, 128], strides = [1, 1]} : vector<16x136xf32> to vector<16x128xf32>
    %30 = vector.extract_strided_slice %23 {offsets = [0, 6], sizes = [16, 128], strides = [1, 1]} : vector<16x136xf32> to vector<16x128xf32>
    %31 = vector.extract_strided_slice %23 {offsets = [0, 7], sizes = [16, 128], strides = [1, 1]} : vector<16x136xf32> to vector<16x128xf32>
    %32 = vector.extract_strided_slice %23 {offsets = [0, 8], sizes = [16, 128], strides = [1, 1]} : vector<16x136xf32> to vector<16x128xf32>
    %33 = tpu.concatenate %24, %25, %26, %27, %28, %29, %30, %31, %32 in 0 : vector<16x128xf32>, vector<16x128xf32>, vector<16x128xf32>, vector<16x128xf32>, vector<16x128xf32>, vector<16x128xf32>, vector<16x128xf32>, vector<16x128xf32>, vector<16x128xf32> -> vector<144x128xf32>
    %c0_14 = arith.constant 0 : index
    %c0_15 = arith.constant 0 : index
    %34 = vector.load %arg4[%c0_14, %c0_15] : memref<16x144xf32, #tpu.memory_space<vmem>>, vector<16x144xf32>
    %cst_16 = arith.constant dense<0.000000e+00> : vector<16x128xf32>
    %35 = tpu.matmul %34, %33, %cst_16 {dimension_numbers = #tpu.dot_dimension_numbers<[1], [0], [0], [1], [0, 0, 1, 1], [], []>} : vector<16x144xf32>, vector<144x128xf32>, vector<16x128xf32> -> vector<16x128xf32>
    %c0_17 = arith.constant 0 : index
    %c0_18 = arith.constant 0 : index
    %36 = vector.load %arg5[%c0_17, %c0_18] : memref<16x1xf32, #tpu.memory_space<vmem>>, vector<16x1xf32>
    %37 = vector.broadcast %36 : vector<16x1xf32> to vector<16x128xf32>
    %38 = arith.addf %35, %37 : vector<16x128xf32>
    %cst_19 = arith.constant 0.000000e+00 : f32
    %39 = vector.broadcast %cst_19 : f32 to vector<16x128xf32>
    %40 = arith.maximumf %38, %39 : vector<16x128xf32>
    %c0_20 = arith.constant 0 : index
    %c4_21 = arith.constant 4 : index
    %41 = vector.load %arg9[%c0_20, %c4_21] : memref<16x136xf32, #tpu.memory_space<vmem>>, vector<16x128xf32>
    tpu.vector_store %arg9[%c0_20, %c4_21], %40 {strides = array<i32>} : memref<16x136xf32, #tpu.memory_space<vmem>>, vector<16x128xf32>,
    %c0_22 = arith.constant 0 : index
    %c0_23 = arith.constant 0 : index
    %42 = vector.load %arg9[%c0_22, %c0_23] : memref<16x136xf32, #tpu.memory_space<vmem>>, vector<16x136xf32>
    %c0_24 = arith.constant 0 : index
    %c0_25 = arith.constant 0 : index
    %43 = vector.load %arg6[%c0_24, %c0_25] : memref<16x9xf32, #tpu.memory_space<vmem>>, vector<16x9xf32>
    %cst_26 = arith.constant 0.000000e+00 : f32
    %44 = vector.broadcast %cst_26 : f32 to vector<16x128xf32>
    %45 = vector.extract_strided_slice %42 {offsets = [0, 0], sizes = [16, 128], strides = [1, 1]} : vector<16x136xf32> to vector<16x128xf32>
    %46 = vector.extract_strided_slice %43 {offsets = [0, 0], sizes = [16, 1], strides = [1, 1]} : vector<16x9xf32> to vector<16x1xf32>
    %47 = vector.broadcast %46 : vector<16x1xf32> to vector<16x128xf32>
    %48 = arith.mulf %45, %47 : vector<16x128xf32>
    %49 = arith.addf %44, %48 : vector<16x128xf32>
    %50 = vector.extract_strided_slice %42 {offsets = [0, 1], sizes = [16, 128], strides = [1, 1]} : vector<16x136xf32> to vector<16x128xf32>
    %51 = vector.extract_strided_slice %43 {offsets = [0, 1], sizes = [16, 1], strides = [1, 1]} : vector<16x9xf32> to vector<16x1xf32>
    %52 = vector.broadcast %51 : vector<16x1xf32> to vector<16x128xf32>
    %53 = arith.mulf %50, %52 : vector<16x128xf32>
    %54 = arith.addf %49, %53 : vector<16x128xf32>
    %55 = vector.extract_strided_slice %42 {offsets = [0, 2], sizes = [16, 128], strides = [1, 1]} : vector<16x136xf32> to vector<16x128xf32>
    %56 = vector.extract_strided_slice %43 {offsets = [0, 2], sizes = [16, 1], strides = [1, 1]} : vector<16x9xf32> to vector<16x1xf32>
    %57 = vector.broadcast %56 : vector<16x1xf32> to vector<16x128xf32>
    %58 = arith.mulf %55, %57 : vector<16x128xf32>
    %59 = arith.addf %54, %58 : vector<16x128xf32>
    %60 = vector.extract_strided_slice %42 {offsets = [0, 3], sizes = [16, 128], strides = [1, 1]} : vector<16x136xf32> to vector<16x128xf32>
    %61 = vector.extract_strided_slice %43 {offsets = [0, 3], sizes = [16, 1], strides = [1, 1]} : vector<16x9xf32> to vector<16x1xf32>
    %62 = vector.broadcast %61 : vector<16x1xf32> to vector<16x128xf32>
    %63 = arith.mulf %60, %62 : vector<16x128xf32>
    %64 = arith.addf %59, %63 : vector<16x128xf32>
    %65 = vector.extract_strided_slice %42 {offsets = [0, 4], sizes = [16, 128], strides = [1, 1]} : vector<16x136xf32> to vector<16x128xf32>
    %66 = vector.extract_strided_slice %43 {offsets = [0, 4], sizes = [16, 1], strides = [1, 1]} : vector<16x9xf32> to vector<16x1xf32>
    %67 = vector.broadcast %66 : vector<16x1xf32> to vector<16x128xf32>
    %68 = arith.mulf %65, %67 : vector<16x128xf32>
    %69 = arith.addf %64, %68 : vector<16x128xf32>
    %70 = vector.extract_strided_slice %42 {offsets = [0, 5], sizes = [16, 128], strides = [1, 1]} : vector<16x136xf32> to vector<16x128xf32>
    %71 = vector.extract_strided_slice %43 {offsets = [0, 5], sizes = [16, 1], strides = [1, 1]} : vector<16x9xf32> to vector<16x1xf32>
    %72 = vector.broadcast %71 : vector<16x1xf32> to vector<16x128xf32>
    %73 = arith.mulf %70, %72 : vector<16x128xf32>
    %74 = arith.addf %69, %73 : vector<16x128xf32>
    %75 = vector.extract_strided_slice %42 {offsets = [0, 6], sizes = [16, 128], strides = [1, 1]} : vector<16x136xf32> to vector<16x128xf32>
    %76 = vector.extract_strided_slice %43 {offsets = [0, 6], sizes = [16, 1], strides = [1, 1]} : vector<16x9xf32> to vector<16x1xf32>
    %77 = vector.broadcast %76 : vector<16x1xf32> to vector<16x128xf32>
    %78 = arith.mulf %75, %77 : vector<16x128xf32>
    %79 = arith.addf %74, %78 : vector<16x128xf32>
    %80 = vector.extract_strided_slice %42 {offsets = [0, 7], sizes = [16, 128], strides = [1, 1]} : vector<16x136xf32> to vector<16x128xf32>
    %81 = vector.extract_strided_slice %43 {offsets = [0, 7], sizes = [16, 1], strides = [1, 1]} : vector<16x9xf32> to vector<16x1xf32>
    %82 = vector.broadcast %81 : vector<16x1xf32> to vector<16x128xf32>
    %83 = arith.mulf %80, %82 : vector<16x128xf32>
    %84 = arith.addf %79, %83 : vector<16x128xf32>
    %85 = vector.extract_strided_slice %42 {offsets = [0, 8], sizes = [16, 128], strides = [1, 1]} : vector<16x136xf32> to vector<16x128xf32>
    %86 = vector.extract_strided_slice %43 {offsets = [0, 8], sizes = [16, 1], strides = [1, 1]} : vector<16x9xf32> to vector<16x1xf32>
    %87 = vector.broadcast %86 : vector<16x1xf32> to vector<16x128xf32>
    %88 = arith.mulf %85, %87 : vector<16x128xf32>
    %89 = arith.addf %84, %88 : vector<16x128xf32>
    %cst_27 = arith.constant dense<0.000000e+00> : vector<128xf32>
    %90 = vector.multi_reduction <add>, %89, %cst_27 [0] : vector<16x128xf32> to vector<128xf32>
    %91 = vector.shape_cast %90 : vector<128xf32> to vector<1x128xf32>
    %c0_28 = arith.constant 0 : index
    %c0_29 = arith.constant 0 : index
    %92 = vector.load %arg7[%c0_28, %c0_29] : memref<1x1xf32, #tpu.memory_space<vmem>>, vector<1x1xf32>
    %93 = vector.broadcast %92 : vector<1x1xf32> to vector<1x128xf32>
    %94 = arith.addf %91, %93 : vector<1x128xf32>
    %cst_30 = arith.constant 0.000000e+00 : f32
    %95 = vector.broadcast %cst_30 : f32 to vector<1x128xf32>
    %96 = arith.maximumf %94, %95 : vector<1x128xf32>
    %c0_31 = arith.constant 0 : index
    %c0_32 = arith.constant 0 : index
    %c0_33 = arith.constant 0 : index
    %97 = vector.load %arg8[%c0_31, %c0_32, %c0_33] : memref<1x1x128xf32, #tpu.memory_space<vmem>>, vector<1x1x128xf32>
    %98 = vector.shape_cast %97 : vector<1x1x128xf32> to vector<1x128xf32>
    %99 = vector.shape_cast %96 : vector<1x128xf32> to vector<1x1x128xf32>
    tpu.vector_store %arg8[%c0_31, %c0_32, %c0_33], %99 {strides = array<i32>} : memref<1x1x128xf32, #tpu.memory_space<vmem>>, vector<1x1x128xf32>,
    return
  }
  func.func @transform_0(%arg0: i32) -> (i32, i32, i32) {
    %c0_i32 = arith.constant 0 : i32
    %c0_i32_0 = arith.constant 0 : i32
    %c0_i32_1 = arith.constant 0 : i32
    return %arg0, %c0_i32, %c0_i32_0 : i32, i32, i32
  }
  func.func @transform_1(%arg0: i32) -> (i32, i32) {
    %c0_i32 = arith.constant 0 : i32
    %c0_i32_0 = arith.constant 0 : i32
    %c0_i32_1 = arith.constant 0 : i32
    return %c0_i32, %c0_i32_0 : i32, i32
  }
  func.func @transform_2(%arg0: i32) -> (i32, i32) {
    %c0_i32 = arith.constant 0 : i32
    %c0_i32_0 = arith.constant 0 : i32
    %c0_i32_1 = arith.constant 0 : i32
    return %c0_i32, %c0_i32_0 : i32, i32
  }
  func.func @transform_3(%arg0: i32) -> (i32, i32) {
    %c0_i32 = arith.constant 0 : i32
    %c0_i32_0 = arith.constant 0 : i32
    %c0_i32_1 = arith.constant 0 : i32
    return %c0_i32, %c0_i32_0 : i32, i32
  }
  func.func @transform_4(%arg0: i32) -> (i32, i32) {
    %c0_i32 = arith.constant 0 : i32
    %c0_i32_0 = arith.constant 0 : i32
    %c0_i32_1 = arith.constant 0 : i32
    return %c0_i32, %c0_i32_0 : i32, i32
  }
  func.func @transform_5(%arg0: i32) -> (i32, i32) {
    %c0_i32 = arith.constant 0 : i32
    %c0_i32_0 = arith.constant 0 : i32
    %c0_i32_1 = arith.constant 0 : i32
    return %c0_i32, %c0_i32_0 : i32, i32
  }
  func.func @transform_6(%arg0: i32) -> (i32, i32) {
    %c0_i32 = arith.constant 0 : i32
    %c0_i32_0 = arith.constant 0 : i32
    %c0_i32_1 = arith.constant 0 : i32
    return %c0_i32, %c0_i32_0 : i32, i32
  }
  func.func @transform_7(%arg0: i32) -> (i32, i32, i32) {
    %c0_i32 = arith.constant 0 : i32
    %c0_i32_0 = arith.constant 0 : i32
    %c0_i32_1 = arith.constant 0 : i32
    return %arg0, %c0_i32, %c0_i32_0 : i32, i32, i32
  }
}

</mosaic_0001>

<llo_original>
// kernel: tpu_custom_call.1
$region0: #{tpu_custom_call.1}
  #allocation0 [shape = 'u32[]', space=smem, size = 0x4, offset = 0x4, fixed_abs, tag = 'smem constant byte address 0x4 - core index']
  #allocation1 [shape = 'u32[144,128]{1,0:T(1,128)}', space=vmem, size = 0x12000, scoped, tag = 'internal scratch']
  #allocation2 [shape = 'f32[16,136]{1,0:T(8,128)}', space=vmem, size = 0x4000, scoped, tag = 'scratch operand']
  #allocation3 [shape = 'f32[1,1]{1,0:T(1,128)S(1)}', space=vmem, size = 0x200, scoped, tag = 'scoped memory for tpu_custom_call.1']
  %s0 = inlined_call_operand.hbm [shape: f32[2,24,136], index: 0, kind: input, shape index: {}]
  %s1 = inlined_call_operand.vmem [shape: f32[16,216], index: 1, kind: input, shape index: {}]
  %s2 = inlined_call_operand.vmem [shape: f32[16,1], index: 2, kind: input, shape index: {}]
  %s3 = inlined_call_operand.hbm [shape: f32[16,144], index: 3, kind: input, shape index: {}]
  %s4 = inlined_call_operand.vmem [shape: f32[16,1], index: 4, kind: input, shape index: {}]
  %s5 = inlined_call_operand.hbm [shape: f32[16,9], index: 5, kind: input, shape index: {}]
  %s6 = inlined_call_operand.<no memory space> [shape: f32[1,1], index: 6, kind: input, shape index: {}]
  %s7 = inlined_call_operand.hbm [shape: f32[2,1,128], index: 7, kind: output, shape index: {}]
  %s8 = sld [smem:[#allocation0]]
  $region73: #{tpu_custom_call.1} parent=0
    _
  %s10 = ssub.s32 1, %s8
  %s11 = scalar_select 0, %s10, %s8
  %v12 = vstv %s6
  %13 = vst [vmem:[#allocation3] sm:$0x1] %v12
  $region1: #{tpu_custom_call.1} parent=0
    #allocation4 [shape = 'u8[49152]{0}', space=vmem, size = 0xc000, scoped, tag = 'input window, operand 0']
    #allocation5 [shape = 's32[2]{0}', space=sflag, size = 0x8, scoped, tag = 'scoped memory for tpu_custom_call.1']
    #allocation6 [shape = 's32[2]{0}', space=sflag, size = 0x8, scoped, tag = 'scoped memory for tpu_custom_call.1']
    #allocation7 [shape = 'u8[16384]{0}', space=vmem, size = 0x4000, scoped, tag = 'input window, operand 3, single buffered']
    #allocation8 [shape = 's32[1]{0}', space=sflag, size = 0x4, scoped, tag = 'scoped memory for tpu_custom_call.1']
    #allocation9 [shape = 'u8[8192]{0}', space=vmem, size = 0x2000, scoped, tag = 'input window, operand 5, single buffered']
    #allocation10 [shape = 'u8[1024]{0}', space=vmem, size = 0x400, scoped, tag = 'output window, operand 0']
    %14 = vsyncpa [#allocation5], 0
    %s15 = scalar_lea.sflag [#allocation5], 1
    %16 = vsyncpa %s15, 0
    %17 = vsyncpa [#allocation8], 0
    %18 = vsyncpa [#allocation6], 0
    %s19 = scalar_lea.sflag [#allocation6], 1
    %20 = vsyncpa %s19, 0
    loop: start=0, step=1, limit=4
    $region2: #{tpu_custom_call.1} parent=1 // loop_pre_header
      _
    $region3: #{tpu_custom_call.1} parent=1 // loop_header
      %s22 = sphi 0, %s26
      %p23 = scmp.ge.s32.totalorder %s22, 4
      %s32 = sphi 0, %s34
      %s35 = sphi 0, %s32
      %s36 = sphi 0, %s35
      %s52 = sphi 0, %s36
      %s56 = sphi 0, %s56
      %s58 = sphi 0, %s56
      %s59 = sphi 0, %s58
      %s73 = sphi 0, %s59
      %s77 = sphi 0, %s77
      %s79 = sphi 0, %s77
      %s80 = sphi 0, %s79
      %s94 = sphi 0, %s80
      %s98 = sphi 0, %s98
      %s100 = sphi 0, %s98
      %s101 = sphi 0, %s100
      %s115 = sphi 0, %s101
      %s119 = sphi 0, %s119
      %s121 = sphi 0, %s119
      %s122 = sphi 0, %s121
      %s136 = sphi 0, %s122
      %s140 = sphi 0, %s140
      %s142 = sphi 0, %s140
      %s143 = sphi 0, %s142
      %s157 = sphi 0, %s143
      %s161 = sphi 0, %s161
      %s163 = sphi 0, %s161
      %s164 = sphi 0, %s163
      %s178 = sphi 0, %s164
      %s184 = sphi 0, %s186
      %s187 = sphi 0, %s184
      %s188 = sphi 0, %s187
      %s204 = sphi 0, %s188
    $region4: #{tpu_custom_call.1} parent=1 // loop_header_branch
      %25 = sbr.rel (%p23) target = $region8
    $region5: #{tpu_custom_call.1} parent=1 // loop_body
      %s27 = ssub.s32 %s22, 1
      %s28 = ssub.s32 %s22, 2
      %s29 = sadd.s32 %s22, 1
      %s30 = ssub.s32 %s22, %s29
      %p31 = scmp.eq.s32.totalorder %s30, 0
      %s33 = sadd.s32 %s32, 1
      %s34 = scalar_select %p31, %s32, %s33
      %p37 = pneg %p31
      %p38 = scmp.eq.s32.totalorder %s22, 1
      %p39 = por %p37, %p38
      %p40 = scmp.ne.s32.totalorder %s32, %s35
      %p41 = scmp.eq.s32.totalorder %s22, 0
      %p42 = por %p40, %p41
      %p43 = scmp.ne.s32.totalorder %s32, %s35
      %p44 = scmp.eq.s32.totalorder %s27, 1
      %p45 = por %p43, %p44
      %p46 = scmp.ne.s32.totalorder %s35, %s36
      %p47 = scmp.eq.s32.totalorder %s27, 0
      %p48 = por %p46, %p47
      %p49 = scmp.ne.s32.totalorder %s35, %s36
      %p50 = scmp.eq.s32.totalorder %s28, 1
      %p51 = por %p49, %p50
      %p53 = scmp.ne.s32.totalorder %s36, %s52
      %p54 = scmp.eq.s32.totalorder %s28, 0
      %p55 = por %p53, %p54
      %s57 = sadd.s32 %s56, 1
      %p60 = scmp.eq.s32.totalorder %s22, 1
      %p61 = scmp.ne.s32.totalorder %s56, %s58
      %p62 = scmp.eq.s32.totalorder %s22, 0
      %p63 = por %p61, %p62
      %p64 = scmp.ne.s32.totalorder %s56, %s58
      %p65 = scmp.eq.s32.totalorder %s27, 1
      %p66 = por %p64, %p65
      %p67 = scmp.ne.s32.totalorder %s58, %s59
      %p68 = scmp.eq.s32.totalorder %s27, 0
      %p69 = por %p67, %p68
      %p70 = scmp.ne.s32.totalorder %s58, %s59
      %p71 = scmp.eq.s32.totalorder %s28, 1
      %p72 = por %p70, %p71
      %p74 = scmp.ne.s32.totalorder %s59, %s73
      %p75 = scmp.eq.s32.totalorder %s28, 0
      %p76 = por %p74, %p75
      %s78 = sadd.s32 %s77, 1
      %p81 = scmp.eq.s32.totalorder %s22, 1
      %p82 = scmp.ne.s32.totalorder %s77, %s79
      %p83 = scmp.eq.s32.totalorder %s22, 0
      %p84 = por %p82, %p83
      %p85 = scmp.ne.s32.totalorder %s77, %s79
      %p86 = scmp.eq.s32.totalorder %s27, 1
      %p87 = por %p85, %p86
      %p88 = scmp.ne.s32.totalorder %s79, %s80
      %p89 = scmp.eq.s32.totalorder %s27, 0
      %p90 = por %p88, %p89
      %p91 = scmp.ne.s32.totalorder %s79, %s80
      %p92 = scmp.eq.s32.totalorder %s28, 1
      %p93 = por %p91, %p92
      %p95 = scmp.ne.s32.totalorder %s80, %s94
      %p96 = scmp.eq.s32.totalorder %s28, 0
      %p97 = por %p95, %p96
      %s99 = sadd.s32 %s98, 1
      %p102 = scmp.eq.s32.totalorder %s22, 1
      %p103 = scmp.ne.s32.totalorder %s98, %s100
      %p104 = scmp.eq.s32.totalorder %s22, 0
      %p105 = por %p103, %p104
      %p106 = scmp.ne.s32.totalorder %s98, %s100
      %p107 = scmp.eq.s32.totalorder %s27, 1
      %p108 = por %p106, %p107
      %p109 = scmp.ne.s32.totalorder %s100, %s101
      %p110 = scmp.eq.s32.totalorder %s27, 0
      %p111 = por %p109, %p110
      %p112 = scmp.ne.s32.totalorder %s100, %s101
      %p113 = scmp.eq.s32.totalorder %s28, 1
      %p114 = por %p112, %p113
      %p116 = scmp.ne.s32.totalorder %s101, %s115
      %p117 = scmp.eq.s32.totalorder %s28, 0
      %p118 = por %p116, %p117
      %s120 = sadd.s32 %s119, 1
      %p123 = scmp.eq.s32.totalorder %s22, 1
      %p124 = scmp.ne.s32.totalorder %s119, %s121
      %p125 = scmp.eq.s32.totalorder %s22, 0
      %p126 = por %p124, %p125
      %p127 = scmp.ne.s32.totalorder %s119, %s121
      %p128 = scmp.eq.s32.totalorder %s27, 1
      %p129 = por %p127, %p128
      %p130 = scmp.ne.s32.totalorder %s121, %s122
      %p131 = scmp.eq.s32.totalorder %s27, 0
      %p132 = por %p130, %p131
      %p133 = scmp.ne.s32.totalorder %s121, %s122
      %p134 = scmp.eq.s32.totalorder %s28, 1
      %p135 = por %p133, %p134
      %p137 = scmp.ne.s32.totalorder %s122, %s136
      %p138 = scmp.eq.s32.totalorder %s28, 0
      %p139 = por %p137, %p138
      %s141 = sadd.s32 %s140, 1
      %p144 = scmp.eq.s32.totalorder %s22, 1
      %p145 = scmp.ne.s32.totalorder %s140, %s142
      %p146 = scmp.eq.s32.totalorder %s22, 0
      %p147 = por %p145, %p146
      %p148 = scmp.ne.s32.totalorder %s140, %s142
      %p149 = scmp.eq.s32.totalorder %s27, 1
      %p150 = por %p148, %p149
      %p151 = scmp.ne.s32.totalorder %s142, %s143
      %p152 = scmp.eq.s32.totalorder %s27, 0
      %p153 = por %p151, %p152
      %p154 = scmp.ne.s32.totalorder %s142, %s143
      %p155 = scmp.eq.s32.totalorder %s28, 1
      %p156 = por %p154, %p155
      %p158 = scmp.ne.s32.totalorder %s143, %s157
      %p159 = scmp.eq.s32.totalorder %s28, 0
      %p160 = por %p158, %p159
      %s162 = sadd.s32 %s161, 1
      %p165 = scmp.eq.s32.totalorder %s22, 1
      %p166 = scmp.ne.s32.totalorder %s161, %s163
      %p167 = scmp.eq.s32.totalorder %s22, 0
      %p168 = por %p166, %p167
      %p169 = scmp.ne.s32.totalorder %s161, %s163
      %p170 = scmp.eq.s32.totalorder %s27, 1
      %p171 = por %p169, %p170
      %p172 = scmp.ne.s32.totalorder %s163, %s164
      %p173 = scmp.eq.s32.totalorder %s27, 0
      %p174 = por %p172, %p173
      %p175 = scmp.ne.s32.totalorder %s163, %s164
      %p176 = scmp.eq.s32.totalorder %s28, 1
      %p177 = por %p175, %p176
      %p179 = scmp.ne.s32.totalorder %s164, %s178
      %p180 = scmp.eq.s32.totalorder %s28, 0
      %p181 = por %p179, %p180
      %s182 = ssub.s32 %s22, %s29
      %p183 = scmp.eq.s32.totalorder %s182, 0
      %s185 = sadd.s32 %s184, 1
      %s186 = scalar_select %p183, %s184, %s185
      %p189 = pneg %p183
      %p190 = scmp.eq.s32.totalorder %s22, 1
      %p191 = por %p189, %p190
      %p192 = scmp.ne.s32.totalorder %s184, %s187
      %p193 = scmp.eq.s32.totalorder %s22, 0
      %p194 = por %p192, %p193
      %p195 = scmp.ne.s32.totalorder %s184, %s187
      %p196 = scmp.eq.s32.totalorder %s27, 1
      %p197 = por %p195, %p196
      %p198 = scmp.ne.s32.totalorder %s187, %s188
      %p199 = scmp.eq.s32.totalorder %s27, 0
      %p200 = por %p198, %p199
      %p201 = scmp.ne.s32.totalorder %s187, %s188
      %p202 = scmp.eq.s32.totalorder %s28, 1
      %p203 = por %p201, %p202
      %p205 = scmp.ne.s32.totalorder %s188, %s204
      %p206 = scmp.eq.s32.totalorder %s28, 0
      %p207 = por %p205, %p206
      %p208 = scmp.le.s32.totalorder 1, %s22
      %p209 = scmp.lt.s32.totalorder %s22, 3
      %p210 = pnand %p208, %p209
      %p211 = pneg %p210
      // Predicated region
      $region9: #{tpu_custom_call.1} parent=5 // pred_check
        _
      $region10: #{tpu_custom_call.1} parent=5 // pred_check_branch
        %213 = sbr.rel (%p210) target = $region12
      $region11: #{tpu_custom_call.1} parent=5 // pred_region
        %s214 = ssub.s32 %s22, 1
        // Predicated region
        $region13: #{tpu_custom_call.1} parent=11 // pred_check
          %p215 = pneg %p69
        $region14: #{tpu_custom_call.1} parent=11 // pred_check_branch
          %217 = sbr.rel (%p215) target = $region16
        $region15: #{tpu_custom_call.1} parent=11 // pred_region
          _
        $region16: #{tpu_custom_call.1} parent=11 // pred_fallthru
          _
        // Predicated region
        $region17: #{tpu_custom_call.1} parent=11 // pred_check
          %p218 = pneg %p90
        $region18: #{tpu_custom_call.1} parent=11 // pred_check_branch
          %220 = sbr.rel (%p218) target = $region20
        $region19: #{tpu_custom_call.1} parent=11 // pred_region
          _
        $region20: #{tpu_custom_call.1} parent=11 // pred_fallthru
          _
        // Predicated region
        $region21: #{tpu_custom_call.1} parent=11 // pred_check
          %p221 = pneg %p111
        $region22: #{tpu_custom_call.1} parent=11 // pred_check_branch
          %223 = sbr.rel (%p221) target = $region24
        $region23: #{tpu_custom_call.1} parent=11 // pred_region
          %s225 = ssub.s32 512, 512
          %226 = vsyncadd [#allocation8], %s225
          %s227 = sshll.u32 [#allocation7], 4
          %s228 = int_to_ptr.vmem [resolvable:$true] %s227
          %233 = dma.hbm_to_vmem [thread:$0]  %s3, 512, %s228, [#allocation8], 256, 256, 16
        $region24: #{tpu_custom_call.1} parent=11 // pred_fallthru
          _
        // Predicated region
        $region25: #{tpu_custom_call.1} parent=11 // pred_check
          %p234 = pneg %p132
        $region26: #{tpu_custom_call.1} parent=11 // pred_check_branch
          %236 = sbr.rel (%p234) target = $region28
        $region27: #{tpu_custom_call.1} parent=11 // pred_region
          _
        $region28: #{tpu_custom_call.1} parent=11 // pred_fallthru
          _
        // Predicated region
        $region29: #{tpu_custom_call.1} parent=11 // pred_check
          %p237 = pneg %p153
        $region30: #{tpu_custom_call.1} parent=11 // pred_check_branch
          %239 = sbr.rel (%p237) target = $region32
        $region31: #{tpu_custom_call.1} parent=11 // pred_region
          %s241 = ssub.s32 256, 256
          %242 = vsyncadd [#allocation8], %s241
          %s243 = sshll.u32 [#allocation9], 4
          %s244 = int_to_ptr.vmem [resolvable:$true] %s243
          %249 = dma.hbm_to_vmem [thread:$0]  %s5, 256, %s244, [#allocation8], 128, 128, 8
        $region32: #{tpu_custom_call.1} parent=11 // pred_fallthru
          _
        // Predicated region
        $region33: #{tpu_custom_call.1} parent=11 // pred_check
          %p250 = pneg %p174
        $region34: #{tpu_custom_call.1} parent=11 // pred_check_branch
          %252 = sbr.rel (%p250) target = $region36
        $region35: #{tpu_custom_call.1} parent=11 // pred_region
          _
        $region36: #{tpu_custom_call.1} parent=11 // pred_fallthru
          _
      $region12: #{tpu_custom_call.1} parent=5 // pred_fallthru
        _
      %p253 = scmp.lt.s32.totalorder %s22, 2
      // Predicated region
      $region37: #{tpu_custom_call.1} parent=5 // pred_check
        %p254 = pneg %p253
      $region38: #{tpu_custom_call.1} parent=5 // pred_check_branch
        %256 = sbr.rel (%p254) target = $region40
      $region39: #{tpu_custom_call.1} parent=5 // pred_region
        // Predicated region
        $region41: #{tpu_custom_call.1} parent=39 // pred_check
          %p257 = pneg %p42
        $region42: #{tpu_custom_call.1} parent=39 // pred_check_branch
          %259 = sbr.rel (%p257) target = $region44
        $region43: #{tpu_custom_call.1} parent=39 // pred_region
          %s260 = sand.u32 %s32, 1
          %s261 = scalar_lea.sflag [#allocation5], %s260
          %s262 = sand.u32 %s32, 1
          %s263 = smul.addr %s262, 48
          %s264 = scalar_lea.vmem [#allocation4], %s263
          %s266 = ssub.s32 768, 768
          %267 = vsyncadd %s261, %s266
          %s268 = smul.addr %s22, 6
          %s269 = smul.addr %s268, 128
          %s270 = scalar_lea.hbm %s0, %s269
          %s271 = sshll.u32 %s264, 4
          %s272 = int_to_ptr.vmem [resolvable:$true] %s271
          %277 = dma.hbm_to_vmem [thread:$0]  %s270, 768, %s272, %s261, 256, 256, 16
        $region44: #{tpu_custom_call.1} parent=39 // pred_fallthru
          _
      $region40: #{tpu_custom_call.1} parent=5 // pred_fallthru
        _
      %p278 = scmp.le.s32.totalorder 1, %s22
      %p279 = scmp.lt.s32.totalorder %s22, 3
      %p280 = pnand %p278, %p279
      %p281 = pneg %p280
      // Predicated region
      $region45: #{tpu_custom_call.1} parent=5 // pred_check
        _
      $region46: #{tpu_custom_call.1} parent=5 // pred_check_branch
        %283 = sbr.rel (%p280) target = $region48
      $region47: #{tpu_custom_call.1} parent=5 // pred_region
        %s284 = ssub.s32 %s22, 1
        %s285 = sand.u32 %s35, 1
        %s286 = scalar_lea.sflag [#allocation5], %s285
        %s287 = sand.u32 %s35, 1
        %s288 = smul.addr %s287, 48
        %s289 = scalar_lea.vmem [#allocation4], %s288
        // Predicated region
        $region49: #{tpu_custom_call.1} parent=47 // pred_check
          %p290 = pneg %p48
        $region50: #{tpu_custom_call.1} parent=47 // pred_check_branch
          %292 = sbr.rel (%p290) target = $region52
        $region51: #{tpu_custom_call.1} parent=47 // pred_region
          %293 = dma.done %s286, 768
        $region52: #{tpu_custom_call.1} parent=47 // pred_fallthru
          _
        // Predicated region
        $region53: #{tpu_custom_call.1} parent=47 // pred_check
          %p294 = pneg %p111
        $region54: #{tpu_custom_call.1} parent=47 // pred_check_branch
          %296 = sbr.rel (%p294) target = $region56
        $region55: #{tpu_custom_call.1} parent=47 // pred_region
          %297 = dma.done [#allocation8], 512
        $region56: #{tpu_custom_call.1} parent=47 // pred_fallthru
          _
        // Predicated region
        $region57: #{tpu_custom_call.1} parent=47 // pred_check
          %p298 = pneg %p153
        $region58: #{tpu_custom_call.1} parent=47 // pred_check_branch
          %300 = sbr.rel (%p298) target = $region60
        $region59: #{tpu_custom_call.1} parent=47 // pred_region
          %301 = dma.done [#allocation8], 256
        $region60: #{tpu_custom_call.1} parent=47 // pred_fallthru
          _
        %s302 = sand.u32 %s35, 1
        %s303 = scalar_lea.sflag [#allocation5], %s302
        %s304 = sand.u32 %s35, 1
        %s305 = smul.addr %s304, 48
        %s306 = scalar_lea.vmem [#allocation4], %s305
        %p307 = pneg %p48
        %p308 = pneg %p45
        %p309 = pneg %p69
        %p310 = pneg %p66
        %p311 = pneg %p90
        %p312 = pneg %p87
        %p313 = pneg %p111
        %p314 = pneg %p108
        %p315 = pneg %p132
        %p316 = pneg %p129
        %p317 = pneg %p153
        %p318 = pneg %p150
        %p319 = pneg %p174
        %p320 = pneg %p171
        %p321 = pneg %p200
        %p322 = pneg %p197
        %s323 = sand.u32 %s187, 1
        %s324 = scalar_lea.sflag [#allocation6], %s323
        %s325 = sand.u32 %s187, 1
        %s326 = scalar_lea.vmem [#allocation10], %s325
        %vm327 = vcmask 31744
        %328 = vst.msk [vmem:[#allocation2] sm:$0xff] %vm327, 0.0
        %329 = vst.msk [vmem:[#allocation2 + $0x10] sm:$0xff] %vm327, 0.0
        %vm330 = vcmask 64544
        %331 = vst.msk [vmem:[#allocation2 + $0x8] sm:$0xff] %vm330, 0.0
        %332 = vst.msk [vmem:[#allocation2 + $0x18] sm:$0xff] %vm330, 0.0
        %v333 = vld [vmem:[%s289] sm:$0xff]
        %v334 = vld [vmem:[%s289 + $0x8] sm:$0xff]
        %v335 = vld [vmem:[%s289 + $0x10] sm:$0xff]
        %v336 = vld [vmem:[%s289 + $0x18] sm:$0xff]
        %v337 = vld [vmem:[%s289 + $0x20] sm:$0xff]
        %v338 = vld [vmem:[%s289 + $0x28] sm:$0xff]
        %345 = vrot.lane.b32.xlu0 %v333, 127
        %v346 = vpop.permute.xlu0 %345
        %347 = vrot.lane.b32.xlu0 %v334, 127
        %v348 = vpop.permute.xlu0 %347
        %349 = vrot.lane.b32.xlu0 %v335, 127
        %v350 = vpop.permute.xlu0 %349
        %351 = vrot.lane.b32.xlu0 %v336, 127
        %v352 = vpop.permute.xlu0 %351
        %353 = vrot.lane.b32.xlu0 %v337, 127
        %v354 = vpop.permute.xlu0 %353
        %355 = vrot.lane.b32.xlu0 %v338, 127
        %v356 = vpop.permute.xlu0 %355
        %vm357 = vcmask 1039360
        %v358 = vsel %vm357, %v346, %v348
        %v359 = vsel %vm357, %v350, %v352
        %v360 = vsel %vm357, %v354, %v356
        %364 = vrot.lane.b32.xlu0 %v333, 126
        %v365 = vpop.permute.xlu0 %364
        %366 = vrot.lane.b32.xlu0 %v334, 126
        %v367 = vpop.permute.xlu0 %366
        %368 = vrot.lane.b32.xlu0 %v335, 126
        %v369 = vpop.permute.xlu0 %368
        %370 = vrot.lane.b32.xlu0 %v336, 126
        %v371 = vpop.permute.xlu0 %370
        %372 = vrot.lane.b32.xlu0 %v337, 126
        %v373 = vpop.permute.xlu0 %372
        %374 = vrot.lane.b32.xlu0 %v338, 126
        %v375 = vpop.permute.xlu0 %374
        %vm376 = vcmask 1031168
        %v377 = vsel %vm376, %v365, %v367
        %v378 = vsel %vm376, %v369, %v371
        %v379 = vsel %vm376, %v373, %v375
        %383 = vrot.lane.b32.xlu0 %v333, 125
        %v384 = vpop.permute.xlu0 %383
        %385 = vrot.lane.b32.xlu0 %v334, 125
        %v386 = vpop.permute.xlu0 %385
        %387 = vrot.lane.b32.xlu0 %v335, 125
        %v388 = vpop.permute.xlu0 %387
        %389 = vrot.lane.b32.xlu0 %v336, 125
        %v390 = vpop.permute.xlu0 %389
        %391 = vrot.lane.b32.xlu0 %v337, 125
        %v392 = vpop.permute.xlu0 %391
        %393 = vrot.lane.b32.xlu0 %v338, 125
        %v394 = vpop.permute.xlu0 %393
        %vm395 = vcmask 1022976
        %v396 = vsel %vm395, %v384, %v386
        %v397 = vsel %vm395, %v388, %v390
        %v398 = vsel %vm395, %v392, %v394
        %402 = vrot.lane.b32.xlu0 %v333, 124
        %v403 = vpop.permute.xlu0 %402
        %404 = vrot.lane.b32.xlu0 %v334, 124
        %v405 = vpop.permute.xlu0 %404
        %406 = vrot.lane.b32.xlu0 %v335, 124
        %v407 = vpop.permute.xlu0 %406
        %408 = vrot.lane.b32.xlu0 %v336, 124
        %v409 = vpop.permute.xlu0 %408
        %410 = vrot.lane.b32.xlu0 %v337, 124
        %v411 = vpop.permute.xlu0 %410
        %412 = vrot.lane.b32.xlu0 %v338, 124
        %v413 = vpop.permute.xlu0 %412
        %vm414 = vcmask 1014784
        %v415 = vsel %vm414, %v403, %v405
        %v416 = vsel %vm414, %v407, %v409
        %v417 = vsel %vm414, %v411, %v413
        %421 = vrot.lane.b32.xlu0 %v333, 123
        %v422 = vpop.permute.xlu0 %421
        %423 = vrot.lane.b32.xlu0 %v334, 123
        %v424 = vpop.permute.xlu0 %423
        %425 = vrot.lane.b32.xlu0 %v335, 123
        %v426 = vpop.permute.xlu0 %425
        %427 = vrot.lane.b32.xlu0 %v336, 123
        %v428 = vpop.permute.xlu0 %427
        %429 = vrot.lane.b32.xlu0 %v337, 123
        %v430 = vpop.permute.xlu0 %429
        %431 = vrot.lane.b32.xlu0 %v338, 123
        %v432 = vpop.permute.xlu0 %431
        %vm433 = vcmask 1006592
        %v434 = vsel %vm433, %v422, %v424
        %v435 = vsel %vm433, %v426, %v428
        %v436 = vsel %vm433, %v430, %v432
        %440 = vrot.lane.b32.xlu0 %v333, 122
        %v441 = vpop.permute.xlu0 %440
        %442 = vrot.lane.b32.xlu0 %v334, 122
        %v443 = vpop.permute.xlu0 %442
        %444 = vrot.lane.b32.xlu0 %v335, 122
        %v445 = vpop.permute.xlu0 %444
        %446 = vrot.lane.b32.xlu0 %v336, 122
        %v447 = vpop.permute.xlu0 %446
        %448 = vrot.lane.b32.xlu0 %v337, 122
        %v449 = vpop.permute.xlu0 %448
        %450 = vrot.lane.b32.xlu0 %v338, 122
        %v451 = vpop.permute.xlu0 %450
        %vm452 = vcmask 998400
        %v453 = vsel %vm452, %v441, %v443
        %v454 = vsel %vm452, %v445, %v447
        %v455 = vsel %vm452, %v449, %v451
        %459 = vrot.lane.b32.xlu0 %v333, 121
        %v460 = vpop.permute.xlu0 %459
        %461 = vrot.lane.b32.xlu0 %v334, 121
        %v462 = vpop.permute.xlu0 %461
        %463 = vrot.lane.b32.xlu0 %v335, 121
        %v464 = vpop.permute.xlu0 %463
        %465 = vrot.lane.b32.xlu0 %v336, 121
        %v466 = vpop.permute.xlu0 %465
        %467 = vrot.lane.b32.xlu0 %v337, 121
        %v468 = vpop.permute.xlu0 %467
        %469 = vrot.lane.b32.xlu0 %v338, 121
        %v470 = vpop.permute.xlu0 %469
        %vm471 = vcmask 990208
        %v472 = vsel %vm471, %v460, %v462
        %v473 = vsel %vm471, %v464, %v466
        %v474 = vsel %vm471, %v468, %v470
        %478 = vrot.lane.b32.xlu0 %v333, 120
        %v479 = vpop.permute.xlu0 %478
        %480 = vrot.lane.b32.xlu0 %v334, 120
        %v481 = vpop.permute.xlu0 %480
        %482 = vrot.lane.b32.xlu0 %v335, 120
        %v483 = vpop.permute.xlu0 %482
        %484 = vrot.lane.b32.xlu0 %v336, 120
        %v485 = vpop.permute.xlu0 %484
        %486 = vrot.lane.b32.xlu0 %v337, 120
        %v487 = vpop.permute.xlu0 %486
        %488 = vrot.lane.b32.xlu0 %v338, 120
        %v489 = vpop.permute.xlu0 %488
        %vm490 = vcmask 982016
        %v491 = vsel %vm490, %v479, %v481
        %v492 = vsel %vm490, %v483, %v485
        %v493 = vsel %vm490, %v487, %v489
        %v497 = vld [vmem:[%s1] sm:$0xff]
        %v498 = vld [vmem:[%s1 + $0x8] sm:$0xff]
        %v499 = vld [vmem:[%s1 + $0x10] sm:$0xff]
        %v500 = vld [vmem:[%s1 + $0x18] sm:$0xff]
        %v501 = vld [vmem:[%s2] sm:$0xff]
        %v502 = vld [vmem:[%s2 + $0x8] sm:$0xff]
        %504 = vset.pattern.permute.xlu0 0
        %505 = vperm.xlu0 %504, %v501
        %v506 = vpop.permute.xlu0 %505
        %509 = vset.pattern.permute.xlu0 0
        %510 = vperm.xlu0 %509, %v502
        %v511 = vpop.permute.xlu0 %510
        %vm513 = vcmask 719872
        %v515 = vsel %vm513, %v498, 0
        %v518 = vsel %vm513, %v500, 0
        %520 = vmatprep.subr.mxu0 0.0
        %521 = vmatpush1.msra.mxu0 %v434
        %522 = vmatprep.subr.mxu0 0.0
        %523 = vmatpush1.msra.mxu0 %v417
        %524 = vmatprep.subr.mxu0 0.0
        %525 = vmatpush1.msra.mxu0 %v416
        %526 = vmatprep.subr.mxu0 0.0
        %527 = vmatpush1.msra.mxu0 %v415
        %528 = vmatprep.subr.mxu0 0.0
        %529 = vmatpush1.msra.mxu0 %v398
        %530 = vmatprep.subr.mxu0 0.0
        %531 = vmatpush1.msra.mxu0 %v397
        %532 = vmatprep.subr.mxu0 0.0
        %533 = vmatpush1.msra.mxu0 %v396
        %534 = vmatprep.subr.mxu0 0.0
        %535 = vmatpush1.msra.mxu0 %v379
        %536 = vmatprep.subr.mxu0 0.0
        %537 = vmatpush1.msra.mxu0 %v378
        %538 = vmatprep.subr.mxu0 0.0
        %539 = vmatpush1.msra.mxu0 %v377
        %540 = vmatprep.subr.mxu0 0.0
        %541 = vmatpush1.msra.mxu0 %v360
        %542 = vmatprep.subr.mxu0 0.0
        %543 = vmatpush1.msra.mxu0 %v359
        %544 = vmatprep.subr.mxu0 0.0
        %545 = vmatpush1.msra.mxu0 %v358
        %546 = vmatprep.subr.mxu0 0.0
        %547 = vmatpush1.msra.mxu0 %v337
        %548 = vmatprep.subr.mxu0 0.0
        %549 = vmatpush1.msra.mxu0 %v335
        %550 = vmatprep.subr.mxu0 0.0
        %551 = vmatpush1.msra.mxu0 %v333
        %552 = vmatprep.subr.mxu0 0.0
        %553 = vmatpush2.msra.mxu0 0.0
        %554 = vmatprep.subr.mxu0 0.0
        %555 = vmatpush2.msra.mxu0 0.0
        %556 = vmatprep.subr.mxu0 0.0
        %557 = vmatpush2.msra.mxu0 0.0
        %558 = vmatprep.subr.mxu0 0.0
        %559 = vmatpush2.msra.mxu0 0.0
        %560 = vmatprep.subr.mxu0 0.0
        %561 = vmatpush2.msra.mxu0 0.0
        %562 = vmatprep.subr.mxu0 0.0
        %563 = vmatpush2.msra.mxu0 %v493
        %564 = vmatprep.subr.mxu0 0.0
        %565 = vmatpush2.msra.mxu0 %v492
        %566 = vmatprep.subr.mxu0 0.0
        %567 = vmatpush2.msra.mxu0 %v491
        %568 = vmatprep.subr.mxu0 0.0
        %569 = vmatpush2.msra.mxu0 %v474
        %570 = vmatprep.subr.mxu0 0.0
        %571 = vmatpush2.msra.mxu0 %v473
        %572 = vmatprep.subr.mxu0 0.0
        %573 = vmatpush2.msra.mxu0 %v472
        %574 = vmatprep.subr.mxu0 0.0
        %575 = vmatpush2.msra.mxu0 %v455
        %576 = vmatprep.subr.mxu0 0.0
        %577 = vmatpush2.msra.mxu0 %v454
        %578 = vmatprep.subr.mxu0 0.0
        %579 = vmatpush2.msra.mxu0 %v453
        %580 = vmatprep.subr.mxu0 0.0
        %581 = vmatpush2.msra.mxu0 %v436
        %582 = vmatprep.subr.mxu0 0.0
        %583 = vmatpush2.msra.mxu0 %v435
        %584 = vmatprep.mubr.f32.mxu0 %v515
        %585 = vmatmul.mubr.f32.gmra.mxu0 %v497
        %v586 = vpop.f32.mrf.mxu0
        %v587 = vadd.f32 %v506, %v586
        %v588 = vpop.f32.mrf.mxu0
        %589 = vmatprep.mubr.f32.mxu0 %v518
        %590 = vmatmul.mubr.f32.gmra.mxu0 %v499
        %v591 = vpop.f32.mrf.mxu0
        %v592 = vadd.f32 %v511, %v591
        %v593 = vpop.f32.mrf.mxu0
        %594 = vdwg.mxu0
        %v595 = vmax.f32 %v587, 0.0
        %v596 = vmax.f32 %v592, 0.0
        %599 = vrot.lane.b32.xlu0 %v595, 4
        %v600 = vpop.permute.xlu0 %599
        %601 = vrot.lane.b32.xlu0 %v596, 4
        %v602 = vpop.permute.xlu0 %601
        %vm605 = vcmask 1047584
        %606 = vst.msk [vmem:[#allocation2] sm:$0xff] %vm605, %v600
        %607 = vst.msk [vmem:[#allocation2 + $0x8] sm:$0xff] %vm327, %v600
        %608 = vst.msk [vmem:[#allocation2 + $0x10] sm:$0xff] %vm605, %v602
        %609 = vst.msk [vmem:[#allocation2 + $0x18] sm:$0xff] %vm327, %v602
        %v610 = vld [vmem:[#allocation2] sm:$0xff]
        %v611 = vld [vmem:[#allocation2 + $0x8] sm:$0xff]
        %v612 = vld [vmem:[#allocation2 + $0x10] sm:$0xff]
        %v613 = vld [vmem:[#allocation2 + $0x18] sm:$0xff]
        %618 = vrot.lane.b32.xlu0 %v610, 127
        %v619 = vpop.permute.xlu0 %618
        %620 = vrot.lane.b32.xlu0 %v611, 127
        %v621 = vpop.permute.xlu0 %620
        %622 = vrot.lane.b32.xlu0 %v612, 127
        %v623 = vpop.permute.xlu0 %622
        %624 = vrot.lane.b32.xlu0 %v613, 127
        %v625 = vpop.permute.xlu0 %624
        %v626 = vsel %vm357, %v619, %v621
        %v627 = vsel %vm357, %v623, %v625
        %630 = vrot.lane.b32.xlu0 %v610, 126
        %v631 = vpop.permute.xlu0 %630
        %632 = vrot.lane.b32.xlu0 %v611, 126
        %v633 = vpop.permute.xlu0 %632
        %634 = vrot.lane.b32.xlu0 %v612, 126
        %v635 = vpop.permute.xlu0 %634
        %636 = vrot.lane.b32.xlu0 %v613, 126
        %v637 = vpop.permute.xlu0 %636
        %v638 = vsel %vm376, %v631, %v633
        %v639 = vsel %vm376, %v635, %v637
        %642 = vrot.lane.b32.xlu0 %v610, 125
        %v643 = vpop.permute.xlu0 %642
        %644 = vrot.lane.b32.xlu0 %v611, 125
        %v645 = vpop.permute.xlu0 %644
        %646 = vrot.lane.b32.xlu0 %v612, 125
        %v647 = vpop.permute.xlu0 %646
        %648 = vrot.lane.b32.xlu0 %v613, 125
        %v649 = vpop.permute.xlu0 %648
        %v650 = vsel %vm395, %v643, %v645
        %v651 = vsel %vm395, %v647, %v649
        %654 = vrot.lane.b32.xlu0 %v610, 124
        %v655 = vpop.permute.xlu0 %654
        %656 = vrot.lane.b32.xlu0 %v611, 124
        %v657 = vpop.permute.xlu0 %656
        %658 = vrot.lane.b32.xlu0 %v612, 124
        %v659 = vpop.permute.xlu0 %658
        %660 = vrot.lane.b32.xlu0 %v613, 124
        %v661 = vpop.permute.xlu0 %660
        %v662 = vsel %vm414, %v655, %v657
        %v663 = vsel %vm414, %v659, %v661
        %666 = vrot.lane.b32.xlu0 %v610, 123
        %v667 = vpop.permute.xlu0 %666
        %668 = vrot.lane.b32.xlu0 %v611, 123
        %v669 = vpop.permute.xlu0 %668
        %670 = vrot.lane.b32.xlu0 %v612, 123
        %v671 = vpop.permute.xlu0 %670
        %672 = vrot.lane.b32.xlu0 %v613, 123
        %v673 = vpop.permute.xlu0 %672
        %v674 = vsel %vm433, %v667, %v669
        %v675 = vsel %vm433, %v671, %v673
        %678 = vrot.lane.b32.xlu0 %v610, 122
        %v679 = vpop.permute.xlu0 %678
        %680 = vrot.lane.b32.xlu0 %v611, 122
        %v681 = vpop.permute.xlu0 %680
        %682 = vrot.lane.b32.xlu0 %v612, 122
        %v683 = vpop.permute.xlu0 %682
        %684 = vrot.lane.b32.xlu0 %v613, 122
        %v685 = vpop.permute.xlu0 %684
        %v686 = vsel %vm452, %v679, %v681
        %v687 = vsel %vm452, %v683, %v685
        %690 = vrot.lane.b32.xlu0 %v610, 121
        %v691 = vpop.permute.xlu0 %690
        %692 = vrot.lane.b32.xlu0 %v611, 121
        %v693 = vpop.permute.xlu0 %692
        %694 = vrot.lane.b32.xlu0 %v612, 121
        %v695 = vpop.permute.xlu0 %694
        %696 = vrot.lane.b32.xlu0 %v613, 121
        %v697 = vpop.permute.xlu0 %696
        %v698 = vsel %vm471, %v691, %v693
        %v699 = vsel %vm471, %v695, %v697
        %702 = vrot.lane.b32.xlu0 %v610, 120
        %v703 = vpop.permute.xlu0 %702
        %704 = vrot.lane.b32.xlu0 %v611, 120
        %v705 = vpop.permute.xlu0 %704
        %706 = vrot.lane.b32.xlu0 %v612, 120
        %v707 = vpop.permute.xlu0 %706
        %708 = vrot.lane.b32.xlu0 %v613, 120
        %v709 = vpop.permute.xlu0 %708
        %v710 = vsel %vm490, %v703, %v705
        %v711 = vsel %vm490, %v707, %v709
        %v714 = vld [vmem:[#allocation7] sm:$0xff]
        %v715 = vld [vmem:[#allocation7 + $0x8] sm:$0xff]
        %v716 = vld [vmem:[#allocation7 + $0x10] sm:$0xff]
        %v717 = vld [vmem:[#allocation7 + $0x18] sm:$0xff]
        %v718 = vld [vmem:[%s4] sm:$0xff]
        %v719 = vld [vmem:[%s4 + $0x8] sm:$0xff]
        %721 = vset.pattern.permute.xlu0 0
        %722 = vperm.xlu0 %721, %v718
        %v723 = vpop.permute.xlu0 %722
        %726 = vset.pattern.permute.xlu0 0
        %727 = vperm.xlu0 %726, %v719
        %v728 = vpop.permute.xlu0 %727
        %vm730 = vcmask 130048
        %v732 = vsel %vm730, %v715, 0
        %v735 = vsel %vm730, %v717, 0
        %737 = vmatprep.subr.mxu0 0.0
        %738 = vmatpush1.msra.mxu0 %v699
        %739 = vmatprep.subr.mxu0 0.0
        %740 = vmatpush1.msra.mxu0 %v698
        %741 = vmatprep.subr.mxu0 0.0
        %742 = vmatpush1.msra.mxu0 %v687
        %743 = vmatprep.subr.mxu0 0.0
        %744 = vmatpush1.msra.mxu0 %v686
        %745 = vmatprep.subr.mxu0 0.0
        %746 = vmatpush1.msra.mxu0 %v675
        %747 = vmatprep.subr.mxu0 0.0
        %748 = vmatpush1.msra.mxu0 %v674
        %749 = vmatprep.subr.mxu0 0.0
        %750 = vmatpush1.msra.mxu0 %v663
        %751 = vmatprep.subr.mxu0 0.0
        %752 = vmatpush1.msra.mxu0 %v662
        %753 = vmatprep.subr.mxu0 0.0
        %754 = vmatpush1.msra.mxu0 %v651
        %755 = vmatprep.subr.mxu0 0.0
        %756 = vmatpush1.msra.mxu0 %v650
        %757 = vmatprep.subr.mxu0 0.0
        %758 = vmatpush1.msra.mxu0 %v639
        %759 = vmatprep.subr.mxu0 0.0
        %760 = vmatpush1.msra.mxu0 %v638
        %761 = vmatprep.subr.mxu0 0.0
        %762 = vmatpush1.msra.mxu0 %v627
        %763 = vmatprep.subr.mxu0 0.0
        %764 = vmatpush1.msra.mxu0 %v626
        %765 = vmatprep.subr.mxu0 0.0
        %766 = vmatpush1.msra.mxu0 %v612
        %767 = vmatprep.subr.mxu0 0.0
        %768 = vmatpush1.msra.mxu0 %v610
        %769 = vmatprep.subr.mxu0 0.0
        %770 = vmatpush2.msra.mxu0 0.0
        %771 = vmatprep.subr.mxu0 0.0
        %772 = vmatpush2.msra.mxu0 0.0
        %773 = vmatprep.subr.mxu0 0.0
        %774 = vmatpush2.msra.mxu0 0.0
        %775 = vmatprep.subr.mxu0 0.0
        %776 = vmatpush2.msra.mxu0 0.0
        %777 = vmatprep.subr.mxu0 0.0
        %778 = vmatpush2.msra.mxu0 0.0
        %779 = vmatprep.subr.mxu0 0.0
        %780 = vmatpush2.msra.mxu0 0.0
        %781 = vmatprep.subr.mxu0 0.0
        %782 = vmatpush2.msra.mxu0 0.0
        %783 = vmatprep.subr.mxu0 0.0
        %784 = vmatpush2.msra.mxu0 0.0
        %785 = vmatprep.subr.mxu0 0.0
        %786 = vmatpush2.msra.mxu0 0.0
        %787 = vmatprep.subr.mxu0 0.0
        %788 = vmatpush2.msra.mxu0 0.0
        %789 = vmatprep.subr.mxu0 0.0
        %790 = vmatpush2.msra.mxu0 0.0
        %791 = vmatprep.subr.mxu0 0.0
        %792 = vmatpush2.msra.mxu0 0.0
        %793 = vmatprep.subr.mxu0 0.0
        %794 = vmatpush2.msra.mxu0 0.0
        %795 = vmatprep.subr.mxu0 0.0
        %796 = vmatpush2.msra.mxu0 0.0
        %797 = vmatprep.subr.mxu0 0.0
        %798 = vmatpush2.msra.mxu0 %v711
        %799 = vmatprep.subr.mxu0 0.0
        %800 = vmatpush2.msra.mxu0 %v710
        %801 = vmatprep.mubr.f32.mxu0 %v732
        %802 = vmatmul.mubr.f32.gmra.mxu0 %v714
        %v803 = vpop.f32.mrf.mxu0
        %v804 = vadd.f32 %v723, %v803
        %v805 = vpop.f32.mrf.mxu0
        %806 = vmatprep.mubr.f32.mxu0 %v735
        %807 = vmatmul.mubr.f32.gmra.mxu0 %v716
        %v808 = vpop.f32.mrf.mxu0
        %v809 = vadd.f32 %v728, %v808
        %v810 = vpop.f32.mrf.mxu0
        %811 = vdwg.mxu0
        %v812 = vmax.f32 %v804, 0.0
        %v813 = vmax.f32 %v809, 0.0
        %816 = vrot.lane.b32.xlu0 %v812, 4
        %v817 = vpop.permute.xlu0 %816
        %818 = vrot.lane.b32.xlu0 %v813, 4
        %v819 = vpop.permute.xlu0 %818
        %822 = vst.msk [vmem:[#allocation2] sm:$0xff] %vm605, %v817
        %823 = vst.msk [vmem:[#allocation2 + $0x8] sm:$0xff] %vm327, %v817
        %824 = vst.msk [vmem:[#allocation2 + $0x10] sm:$0xff] %vm605, %v819
        %825 = vst.msk [vmem:[#allocation2 + $0x18] sm:$0xff] %vm327, %v819
        %v826 = vld [vmem:[#allocation2] sm:$0xff]
        %v827 = vld [vmem:[#allocation2 + $0x8] sm:$0xff]
        %v828 = vld [vmem:[#allocation2 + $0x10] sm:$0xff]
        %v829 = vld [vmem:[#allocation2 + $0x18] sm:$0xff]
        %v830 = vld [vmem:[#allocation9] sm:$0xff]
        %v831 = vld [vmem:[#allocation9 + $0x8] sm:$0xff]
        %833 = vset.pattern.permute.xlu0 0
        %834 = vperm.xlu0 %833, %v830
        %v835 = vpop.permute.xlu0 %834
        %838 = vset.pattern.permute.xlu0 0
        %839 = vperm.xlu0 %838, %v831
        %v840 = vpop.permute.xlu0 %839
        %v842 = vmul.f32 %v826, %v835
        %v843 = vmul.f32 %v828, %v840
        %v844 = vadd.f32 %v842, 0.0
        %v845 = vadd.f32 %v843, 0.0
        %846 = vset.pattern.permute.xlu0 1
        %847 = vperm.xlu0 %846, %v830
        %v848 = vpop.permute.xlu0 %847
        %850 = vset.pattern.permute.xlu0 1
        %851 = vperm.xlu0 %850, %v831
        %v852 = vpop.permute.xlu0 %851
        %v854 = vmul.f32 %v826, %v848
        %v855 = vmul.f32 %v827, %v848
        %v856 = vmul.f32 %v828, %v852
        %v857 = vmul.f32 %v829, %v852
        %862 = vrot.lane.b32.xlu0 %v854, 127
        %v863 = vpop.permute.xlu0 %862
        %864 = vrot.lane.b32.xlu0 %v855, 127
        %v865 = vpop.permute.xlu0 %864
        %866 = vrot.lane.b32.xlu0 %v856, 127
        %v867 = vpop.permute.xlu0 %866
        %868 = vrot.lane.b32.xlu0 %v857, 127
        %v869 = vpop.permute.xlu0 %868
        %v870 = vsel %vm357, %v863, %v865
        %v871 = vsel %vm357, %v867, %v869
        %v874 = vadd.f32 %v844, %v870
        %v875 = vadd.f32 %v845, %v871
        %876 = vset.pattern.permute.xlu0 2
        %877 = vperm.xlu0 %876, %v830
        %v878 = vpop.permute.xlu0 %877
        %880 = vset.pattern.permute.xlu0 2
        %881 = vperm.xlu0 %880, %v831
        %v882 = vpop.permute.xlu0 %881
        %v884 = vmul.f32 %v826, %v878
        %v885 = vmul.f32 %v827, %v878
        %v886 = vmul.f32 %v828, %v882
        %v887 = vmul.f32 %v829, %v882
        %892 = vrot.lane.b32.xlu0 %v884, 126
        %v893 = vpop.permute.xlu0 %892
        %894 = vrot.lane.b32.xlu0 %v885, 126
        %v895 = vpop.permute.xlu0 %894
        %896 = vrot.lane.b32.xlu0 %v886, 126
        %v897 = vpop.permute.xlu0 %896
        %898 = vrot.lane.b32.xlu0 %v887, 126
        %v899 = vpop.permute.xlu0 %898
        %v900 = vsel %vm376, %v893, %v895
        %v901 = vsel %vm376, %v897, %v899
        %v904 = vadd.f32 %v874, %v900
        %v905 = vadd.f32 %v875, %v901
        %906 = vset.pattern.permute.xlu0 3
        %907 = vperm.xlu0 %906, %v830
        %v908 = vpop.permute.xlu0 %907
        %910 = vset.pattern.permute.xlu0 3
        %911 = vperm.xlu0 %910, %v831
        %v912 = vpop.permute.xlu0 %911
        %v914 = vmul.f32 %v826, %v908
        %v915 = vmul.f32 %v827, %v908
        %v916 = vmul.f32 %v828, %v912
        %v917 = vmul.f32 %v829, %v912
        %922 = vrot.lane.b32.xlu0 %v914, 125
        %v923 = vpop.permute.xlu0 %922
        %924 = vrot.lane.b32.xlu0 %v915, 125
        %v925 = vpop.permute.xlu0 %924
        %926 = vrot.lane.b32.xlu0 %v916, 125
        %v927 = vpop.permute.xlu0 %926
        %928 = vrot.lane.b32.xlu0 %v917, 125
        %v929 = vpop.permute.xlu0 %928
        %v930 = vsel %vm395, %v923, %v925
        %v931 = vsel %vm395, %v927, %v929
        %v934 = vadd.f32 %v904, %v930
        %v935 = vadd.f32 %v905, %v931
        %936 = vset.pattern.permute.xlu0 4
        %937 = vperm.xlu0 %936, %v830
        %v938 = vpop.permute.xlu0 %937
        %940 = vset.pattern.permute.xlu0 4
        %941 = vperm.xlu0 %940, %v831
        %v942 = vpop.permute.xlu0 %941
        %v944 = vmul.f32 %v826, %v938
        %v945 = vmul.f32 %v827, %v938
        %v946 = vmul.f32 %v828, %v942
        %v947 = vmul.f32 %v829, %v942
        %952 = vrot.lane.b32.xlu0 %v944, 124
        %v953 = vpop.permute.xlu0 %952
        %954 = vrot.lane.b32.xlu0 %v945, 124
        %v955 = vpop.permute.xlu0 %954
        %956 = vrot.lane.b32.xlu0 %v946, 124
        %v957 = vpop.permute.xlu0 %956
        %958 = vrot.lane.b32.xlu0 %v947, 124
        %v959 = vpop.permute.xlu0 %958
        %v960 = vsel %vm414, %v953, %v955
        %v961 = vsel %vm414, %v957, %v959
        %v964 = vadd.f32 %v934, %v960
        %v965 = vadd.f32 %v935, %v961
        %966 = vset.pattern.permute.xlu0 5
        %967 = vperm.xlu0 %966, %v830
        %v968 = vpop.permute.xlu0 %967
        %970 = vset.pattern.permute.xlu0 5
        %971 = vperm.xlu0 %970, %v831
        %v972 = vpop.permute.xlu0 %971
        %v974 = vmul.f32 %v826, %v968
        %v975 = vmul.f32 %v827, %v968
        %v976 = vmul.f32 %v828, %v972
        %v977 = vmul.f32 %v829, %v972
        %982 = vrot.lane.b32.xlu0 %v974, 123
        %v983 = vpop.permute.xlu0 %982
        %984 = vrot.lane.b32.xlu0 %v975, 123
        %v985 = vpop.permute.xlu0 %984
        %986 = vrot.lane.b32.xlu0 %v976, 123
        %v987 = vpop.permute.xlu0 %986
        %988 = vrot.lane.b32.xlu0 %v977, 123
        %v989 = vpop.permute.xlu0 %988
        %v990 = vsel %vm433, %v983, %v985
        %v991 = vsel %vm433, %v987, %v989
        %v994 = vadd.f32 %v964, %v990
        %v995 = vadd.f32 %v965, %v991
        %996 = vset.pattern.permute.xlu0 6
        %997 = vperm.xlu0 %996, %v830
        %v998 = vpop.permute.xlu0 %997
        %1000 = vset.pattern.permute.xlu0 6
        %1001 = vperm.xlu0 %1000, %v831
        %v1002 = vpop.permute.xlu0 %1001
        %v1004 = vmul.f32 %v826, %v998
        %v1005 = vmul.f32 %v827, %v998
        %v1006 = vmul.f32 %v828, %v1002
        %v1007 = vmul.f32 %v829, %v1002
        %1012 = vrot.lane.b32.xlu0 %v1004, 122
        %v1013 = vpop.permute.xlu0 %1012
        %1014 = vrot.lane.b32.xlu0 %v1005, 122
        %v1015 = vpop.permute.xlu0 %1014
        %1016 = vrot.lane.b32.xlu0 %v1006, 122
        %v1017 = vpop.permute.xlu0 %1016
        %1018 = vrot.lane.b32.xlu0 %v1007, 122
        %v1019 = vpop.permute.xlu0 %1018
        %v1020 = vsel %vm452, %v1013, %v1015
        %v1021 = vsel %vm452, %v1017, %v1019
        %v1024 = vadd.f32 %v994, %v1020
        %v1025 = vadd.f32 %v995, %v1021
        %1026 = vset.pattern.permute.xlu0 7
        %1027 = vperm.xlu0 %1026, %v830
        %v1028 = vpop.permute.xlu0 %1027
        %1030 = vset.pattern.permute.xlu0 7
        %1031 = vperm.xlu0 %1030, %v831
        %v1032 = vpop.permute.xlu0 %1031
        %v1034 = vmul.f32 %v826, %v1028
        %v1035 = vmul.f32 %v827, %v1028
        %v1036 = vmul.f32 %v828, %v1032
        %v1037 = vmul.f32 %v829, %v1032
        %1042 = vrot.lane.b32.xlu0 %v1034, 121
        %v1043 = vpop.permute.xlu0 %1042
        %1044 = vrot.lane.b32.xlu0 %v1035, 121
        %v1045 = vpop.permute.xlu0 %1044
        %1046 = vrot.lane.b32.xlu0 %v1036, 121
        %v1047 = vpop.permute.xlu0 %1046
        %1048 = vrot.lane.b32.xlu0 %v1037, 121
        %v1049 = vpop.permute.xlu0 %1048
        %v1050 = vsel %vm471, %v1043, %v1045
        %v1051 = vsel %vm471, %v1047, %v1049
        %v1054 = vadd.f32 %v1024, %v1050
        %v1055 = vadd.f32 %v1025, %v1051
        %1056 = vset.pattern.permute.xlu0 8
        %1057 = vperm.xlu0 %1056, %v830
        %v1058 = vpop.permute.xlu0 %1057
        %1060 = vset.pattern.permute.xlu0 8
        %1061 = vperm.xlu0 %1060, %v831
        %v1062 = vpop.permute.xlu0 %1061
        %v1064 = vmul.f32 %v826, %v1058
        %v1065 = vmul.f32 %v827, %v1058
        %v1066 = vmul.f32 %v828, %v1062
        %v1067 = vmul.f32 %v829, %v1062
        %1072 = vrot.lane.b32.xlu0 %v1064, 120
        %v1073 = vpop.permute.xlu0 %1072
        %1074 = vrot.lane.b32.xlu0 %v1065, 120
        %v1075 = vpop.permute.xlu0 %1074
        %1076 = vrot.lane.b32.xlu0 %v1066, 120
        %v1077 = vpop.permute.xlu0 %1076
        %1078 = vrot.lane.b32.xlu0 %v1067, 120
        %v1079 = vpop.permute.xlu0 %1078
        %v1080 = vsel %vm490, %v1073, %v1075
        %v1081 = vsel %vm490, %v1077, %v1079
        %v1084 = vadd.f32 %v1054, %v1080
        %v1085 = vadd.f32 %v1055, %v1081
        %v1086 = vadd.f32 %v1084, %v1085
        %v1087 = vrot.slane %v1086, 4
        %v1088 = vadd.f32 %v1086, %v1087
        %v1089 = vrot.slane %v1088, 2
        %v1090 = vadd.f32 %v1088, %v1089
        %v1091 = vrot.slane %v1090, 1
        %v1092 = vadd.f32 %v1090, %v1091
        %v1093 = vld [vmem:[#allocation3] sm:$0x1]
        %1095 = vset.pattern.permute.xlu0 0
        %1096 = vperm.xlu0 %1095, %v1093
        %v1097 = vpop.permute.xlu0 %1096
        %v1099 = vlaneseq
        %v1100 = vshrl.u32 %v1099, 7
        %v1101 = vsub.s32 0, %v1100
        %v1102 = vrot.slane %v1097, %v1101
        %v1103 = vadd.f32 %v1092, %v1102
        %v1104 = vmax.f32 %v1103, 0.0
        %1105 = vst [vmem:[%s326] sm:$0x1] %v1104
        %s1106 = sand.u32 %s187, 1
        %s1107 = scalar_lea.sflag [#allocation6], %s1106
        %s1108 = sand.u32 %s187, 1
        %s1109 = scalar_lea.vmem [#allocation10], %s1108
        // Predicated region
        $region61: #{tpu_custom_call.1} parent=47 // pred_check
          %p1110 = pneg %p197
        $region62: #{tpu_custom_call.1} parent=47 // pred_check_branch
          %1112 = sbr.rel (%p1110) target = $region64
        $region63: #{tpu_custom_call.1} parent=47 // pred_region
          %s1114 = ssub.s32 16, 16
          %1115 = vsyncadd %s1107, %s1114
          %s1116 = smul.addr %s27, 16
          %s1117 = scalar_lea.hbm %s7, %s1116
          %s1119 = sshll.u32 %s1109, 4
          %s1120 = int_to_ptr.vmem [resolvable:$true] %s1119
          %1122 = dma.vmem_to_hbm [thread:$0]  %s1120, 16, %s1117, %s1107
        $region64: #{tpu_custom_call.1} parent=47 // pred_fallthru
          _
      $region48: #{tpu_custom_call.1} parent=5 // pred_fallthru
        _
      %p1123 = scmp.le.s32.totalorder 2, %s22
      // Predicated region
      $region65: #{tpu_custom_call.1} parent=5 // pred_check
        %p1124 = pneg %p1123
      $region66: #{tpu_custom_call.1} parent=5 // pred_check_branch
        %1126 = sbr.rel (%p1124) target = $region68
      $region67: #{tpu_custom_call.1} parent=5 // pred_region
        %s1127 = ssub.s32 %s22, 2
        // Predicated region
        $region69: #{tpu_custom_call.1} parent=67 // pred_check
          %p1128 = pneg %p203
        $region70: #{tpu_custom_call.1} parent=67 // pred_check_branch
          %1130 = sbr.rel (%p1128) target = $region72
        $region71: #{tpu_custom_call.1} parent=67 // pred_region
          %s1131 = sand.u32 %s188, 1
          %s1132 = scalar_lea.sflag [#allocation6], %s1131
          %s1133 = sand.u32 %s188, 1
          %s1134 = scalar_lea.vmem [#allocation10], %s1133
          %1135 = dma.done %s1132, 16
        $region72: #{tpu_custom_call.1} parent=67 // pred_fallthru
          _
      $region68: #{tpu_custom_call.1} parent=5 // pred_fallthru
        _
    $region6: #{tpu_custom_call.1} parent=1 // loop_footer
      %s26 = sadd.s32 1, %s22
    $region7: #{tpu_custom_call.1} parent=1 // loop_footer_branch
      %21 = sbr.rel target = $region3
    $region8: #{tpu_custom_call.1} parent=1 // loop_exit
      _
    %1136 = vsyncpa [#allocation5], 1
    %s1137 = scalar_lea.sflag [#allocation5], 1
    %1138 = vsyncpa %s1137, 1
    %1139 = vsyncpa [#allocation8], 1
    %1140 = vsyncpa [#allocation6], 1
    %s1141 = scalar_lea.sflag [#allocation6], 1
    %1142 = vsyncpa %s1141, 1

</llo_original>
